<compile_context>
chip_gen: v6e
topology: v6e:2x2x1
jax: 0.10.0
libtpu: 0.0.40
codegen_flags: <defaults>
</compile_context>

<pallas_src>
import jax
import jax.numpy as jnp
from jax.experimental import pallas as pl
from jax.experimental.pallas import tpu as pltpu


def dqn_kernel(x_ref, w1_ref, b1_ref, w2_ref, b2_ref, w3_ref, b3_ref, o_ref):
    x = x_ref[...].astype(jnp.float32)            # (TB, S)
    w1 = w1_ref[...].astype(jnp.float32)          # (S, H)
    b1 = b1_ref[...].astype(jnp.float32)          # (1, H)

    # ---- Layer 1: Linear(state_dim -> hidden) + ReLU ----
    S = x.shape[1]
    if S < 8:
        # Degenerate small-K matmul (spec: state_dim == 1): pure VPU
        # broadcast FMA, unrolled over the (static, tiny) K axis.
        h1 = b1
        for k in range(S):
            h1 = h1 + x[:, k:k + 1] * w1[k:k + 1, :]
    else:
        h1 = jnp.dot(x.astype(w1_ref.dtype), w1_ref[...],
                     preferred_element_type=jnp.float32) + b1
    h1 = jnp.maximum(h1, 0.0)

    # ---- Layer 2: Linear(hidden -> hidden) + ReLU (the real MXU matmul) ----
    # Casting h to the stored weight dtype enables the bf16 MXU fast path on
    # v6e/v7x when bf16 weights are supplied; accumulation is always f32.
    h2 = jnp.dot(h1.astype(w2_ref.dtype), w2_ref[...],
                 preferred_element_type=jnp.float32)
    h2 = jnp.maximum(h2 + b2_ref[...].astype(jnp.float32), 0.0)

    # ---- Layer 3: Linear(hidden -> action_dim), unpadded narrow output ----
    q = jnp.dot(h2.astype(w3_ref.dtype), w3_ref[...],
                preferred_element_type=jnp.float32)
    o_ref[...] = (q + b3_ref[...].astype(jnp.float32)).astype(o_ref.dtype)


def _batch_tiling(batch, tb_cap):
    """Choose (TB, n_tiles, padded_batch) for the batch grid."""
    # Cap TB at 4096: h1/h2 intermediates (~TB*512 B each) plus the
    # double-buffered x/out tiles and resident weights stay well inside
    # v5e's 16 MiB default scoped VMEM; v6e/v7x have more headroom.
    tb_cap = max(8, min(int(tb_cap), 4096))
    n = max(1, -(-batch // tb_cap))
    if batch > 8:
        n = max(n, 2)            # >=2 tiles so both v7x TensorCores get work
    if n > 2 and n % 2 == 1:
        n += 1                   # even tile count -> balanced megacore split
    tb = max(8, (-(-batch // n) + 7) // 8 * 8)
    return tb, n, n * tb


def dqn_forward(x, params, tb=2048):
    """x: (B, state_dim) f32. params: (in,out) weights and (1,out) biases."""
    w1, b1 = params["w1"], params["b1"]
    w2, b2 = params["w2"], params["b2"]
    w3, b3 = params["w3"], params["b3"]

    B, state_dim = x.shape
    hidden = w1.shape[1]
    action_dim = w3.shape[1]

    TB, n_tiles, Bp = _batch_tiling(B, tb)
    xp = x if Bp == B else jnp.pad(x, ((0, Bp - B), (0, 0)))

    # Weights/biases: constant index_map -> resident in VMEM, not re-DMA'd.
    resident = lambda arr: pl.BlockSpec(arr.shape, lambda i: (0, 0))

    flops = n_tiles * TB * 2 * (
        state_dim * hidden + hidden * hidden + hidden * action_dim)
    bytes_accessed = (
        xp.nbytes + w1.nbytes + b1.nbytes + w2.nbytes + b2.nbytes
        + w3.nbytes + b3.nbytes + Bp * action_dim * 4)

    out = pl.pallas_call(
        dqn_kernel,
        out_shape=jax.ShapeDtypeStruct((Bp, action_dim), jnp.float32),
        grid=(n_tiles,),
        in_specs=[
            pl.BlockSpec((TB, state_dim), lambda i: (i, 0)),
            resident(w1), resident(b1),
            resident(w2), resident(b2),
            resident(w3), resident(b3),
        ],
        out_specs=pl.BlockSpec((TB, action_dim), lambda i: (i, 0)),
        compiler_params=pltpu.CompilerParams(
            dimension_semantics=("parallel",),
        ),
        cost_estimate=pl.CostEstimate(
            flops=flops, transcendentals=0, bytes_accessed=bytes_accessed),
    )(xp, w1, b1, w2, b2, w3, b3)

    return out[:B]


def init_params(key, state_dim, action_dim, hidden_dim):
    """Mimics PyTorch default Linear init: U(-1/sqrt(fan_in), 1/sqrt(fan_in))."""
    def linear(k, fan_in, fan_out):
        kw, kb = jax.random.split(k)
        bound = 1.0 / jnp.sqrt(jnp.float32(fan_in))
        w = jax.random.uniform(kw, (fan_in, fan_out), jnp.float32, -bound, bound)
        b = jax.random.uniform(kb, (1, fan_out), jnp.float32, -bound, bound)
        return w, b

    k1, k2, k3 = jax.random.split(key, 3)
    w1, b1 = linear(k1, state_dim, hidden_dim)
    w2, b2 = linear(k2, hidden_dim, hidden_dim)
    w3, b3 = linear(k3, hidden_dim, action_dim)
    return {"w1": w1, "b1": b1, "w2": w2, "b2": b2, "w3": w3, "b3": b3}


def cast_params_for_mxu(params, dtype=jnp.bfloat16):
    """bf16 weights for the two MXU matmuls (v6e/v7x fast path).

    Biases and the tiny layer-1 weight stay f32 (they are VPU math)."""
    p = dict(params)
    p["w2"] = params["w2"].astype(dtype)
    p["w3"] = params["w3"].astype(dtype)
    return p


def dqn_reference(x, params):
    h1 = jnp.maximum(x @ params["w1"] + params["b1"], 0.0)
    h2 = jnp.maximum(h1 @ params["w2"] + params["b2"], 0.0)
    return h2 @ params["w3"] + params["b3"]


if __name__ == "__main__":
    # Shapes consistent with the module: state_dim=1 (scalar state),
    # action_dim = max out-degree of the road graph (4 here), hidden=128.
    state_dim, action_dim, hidden_dim = 1, 4, 128

    key = jax.random.PRNGKey(0)
    kx, kp = jax.random.split(key)
    params = init_params(kp, state_dim, action_dim, hidden_dim)

    # Case 1: small batch -> two 8-row tiles (keeps both v7x cores busy).
    x_small = jax.random.normal(kx, (16, state_dim), dtype=jnp.float32)
    out_small = jax.block_until_ready(dqn_forward(x_small, params))
    assert out_small.shape == (16, action_dim)
    assert jnp.allclose(out_small, dqn_reference(x_small, params),
                        atol=1e-5, rtol=1e-5)

    # Case 2: ragged batch with a tiny explicit tile cap -> exercises batch
    # padding, the multi-tile grid, and resident-weight index maps.
    x_ragged = jax.random.normal(kx, (10, state_dim), dtype=jnp.float32)
    out_ragged = jax.block_until_ready(dqn_forward(x_ragged, params, tb=8))
    assert out_ragged.shape == (10, action_dim)
    assert jnp.allclose(out_ragged, dqn_reference(x_ragged, params),
                        atol=1e-5, rtol=1e-5)

    # Case 3: larger (replay-buffer-style) batch under the default tb=2048
    # sizing (-> 2 tiles of 192 rows here), f32 and bf16-weight MXU paths.
    x_big = jax.random.normal(kx, (384, state_dim), dtype=jnp.float32)
    out_big = jax.block_until_ready(dqn_forward(x_big, params))
    assert out_big.shape == (384, action_dim)
    assert jnp.allclose(out_big, dqn_reference(x_big, params),
                        atol=1e-5, rtol=1e-5)

    out_bf16 = jax.block_until_ready(
        dqn_forward(x_big, cast_params_for_mxu(params)))
    assert out_bf16.shape == (384, action_dim)
    assert jnp.allclose(out_bf16, dqn_reference(x_big, params),
                        atol=5e-2, rtol=5e-2)

    print("KERNEL_OK")
</pallas_src>

<mosaic_0001>
module attributes {stable_mosaic.version = 11 : i64} {
  func.func @dqn_kernel(%arg0: i32, %arg1: memref<8x1xf32, #tpu.memory_space<vmem>>, %arg2: memref<1x128xf32, #tpu.memory_space<vmem>>, %arg3: memref<1x128xf32, #tpu.memory_space<vmem>>, %arg4: memref<128x128xf32, #tpu.memory_space<vmem>>, %arg5: memref<1x128xf32, #tpu.memory_space<vmem>>, %arg6: memref<128x4xf32, #tpu.memory_space<vmem>>, %arg7: memref<1x4xf32, #tpu.memory_space<vmem>>, %arg8: memref<8x4xf32, #tpu.memory_space<vmem>>) attributes {dimension_semantics = [#tpu.dimension_semantics<parallel>], iteration_bounds = array<i64: 2>, scalar_prefetch = 0 : i64, scratch_operands = 0 : i64, tpu.core_type = #tpu.core_type<tc>, window_params = [{transform_indices = @transform_0, window_bounds = array<i64: 8, 1>}, {pipeline_mode = #tpu.pipeline_mode<synchronous>, transform_indices = @transform_1, window_bounds = array<i64: 1, 128>}, {pipeline_mode = #tpu.pipeline_mode<synchronous>, transform_indices = @transform_2, window_bounds = array<i64: 1, 128>}, {pipeline_mode = #tpu.pipeline_mode<synchronous>, transform_indices = @transform_3, window_bounds = array<i64: 128, 128>}, {pipeline_mode = #tpu.pipeline_mode<synchronous>, transform_indices = @transform_4, window_bounds = array<i64: 1, 128>}, {pipeline_mode = #tpu.pipeline_mode<synchronous>, transform_indices = @transform_5, window_bounds = array<i64: 128, 4>}, {pipeline_mode = #tpu.pipeline_mode<synchronous>, transform_indices = @transform_6, window_bounds = array<i64: 1, 4>}, {transform_indices = @transform_7, window_bounds = array<i64: 8, 4>}]} {
    %c0 = arith.constant 0 : index
    %c0_0 = arith.constant 0 : index
    %0 = vector.load %arg1[%c0, %c0_0] : memref<8x1xf32, #tpu.memory_space<vmem>>, vector<8x1xf32>
    %c0_1 = arith.constant 0 : index
    %c0_2 = arith.constant 0 : index
    %1 = vector.load %arg2[%c0_1, %c0_2] : memref<1x128xf32, #tpu.memory_space<vmem>>, vector<1x128xf32>
    %c0_3 = arith.constant 0 : index
    %c0_4 = arith.constant 0 : index
    %2 = vector.load %arg3[%c0_3, %c0_4] : memref<1x128xf32, #tpu.memory_space<vmem>>, vector<1x128xf32>
    %3 = vector.broadcast %0 : vector<8x1xf32> to vector<8x128xf32>
    %4 = vector.broadcast %1 : vector<1x128xf32> to vector<8x128xf32>
    %5 = arith.mulf %3, %4 : vector<8x128xf32>
    %6 = vector.broadcast %2 : vector<1x128xf32> to vector<8x128xf32>
    %7 = arith.addf %6, %5 : vector<8x128xf32>
    %cst = arith.constant 0.000000e+00 : f32
    %8 = vector.broadcast %cst : f32 to vector<8x128xf32>
    %9 = arith.maximumf %7, %8 : vector<8x128xf32>
    %c0_5 = arith.constant 0 : index
    %c0_6 = arith.constant 0 : index
    %10 = vector.load %arg4[%c0_5, %c0_6] : memref<128x128xf32, #tpu.memory_space<vmem>>, vector<128x128xf32>
    %cst_7 = arith.constant dense<0.000000e+00> : vector<8x128xf32>
    %11 = tpu.matmul %9, %10, %cst_7 {dimension_numbers = #tpu.dot_dimension_numbers<[1], [0], [0], [1], [0, 0, 1, 1], [], []>} : vector<8x128xf32>, vector<128x128xf32>, vector<8x128xf32> -> vector<8x128xf32>
    %c0_8 = arith.constant 0 : index
    %c0_9 = arith.constant 0 : index
    %12 = vector.load %arg5[%c0_8, %c0_9] : memref<1x128xf32, #tpu.memory_space<vmem>>, vector<1x128xf32>
    %13 = vector.broadcast %12 : vector<1x128xf32> to vector<8x128xf32>
    %14 = arith.addf %11, %13 : vector<8x128xf32>
    %cst_10 = arith.constant 0.000000e+00 : f32
    %15 = vector.broadcast %cst_10 : f32 to vector<8x128xf32>
    %16 = arith.maximumf %14, %15 : vector<8x128xf32>
    %c0_11 = arith.constant 0 : index
    %c0_12 = arith.constant 0 : index
    %17 = vector.load %arg6[%c0_11, %c0_12] : memref<128x4xf32, #tpu.memory_space<vmem>>, vector<128x4xf32>
    %cst_13 = arith.constant dense<0.000000e+00> : vector<8x4xf32>
    %18 = tpu.matmul %16, %17, %cst_13 {dimension_numbers = #tpu.dot_dimension_numbers<[1], [0], [0], [1], [0, 0, 1, 1], [], []>} : vector<8x128xf32>, vector<128x4xf32>, vector<8x4xf32> -> vector<8x4xf32>
    %c0_14 = arith.constant 0 : index
    %c0_15 = arith.constant 0 : index
    %19 = vector.load %arg7[%c0_14, %c0_15] : memref<1x4xf32, #tpu.memory_space<vmem>>, vector<1x4xf32>
    %20 = vector.broadcast %19 : vector<1x4xf32> to vector<8x4xf32>
    %21 = arith.addf %18, %20 : vector<8x4xf32>
    %c0_16 = arith.constant 0 : index
    %c0_17 = arith.constant 0 : index
    %22 = vector.load %arg8[%c0_16, %c0_17] : memref<8x4xf32, #tpu.memory_space<vmem>>, vector<8x4xf32>
    tpu.vector_store %arg8[%c0_16, %c0_17], %21 {strides = array<i32>} : memref<8x4xf32, #tpu.memory_space<vmem>>, vector<8x4xf32>,
    return
  }
  func.func @transform_0(%arg0: i32) -> (i32, i32) {
    %c0_i32 = arith.constant 0 : i32
    %c0_i32_0 = arith.constant 0 : i32
    return %arg0, %c0_i32 : i32, i32
  }
  func.func @transform_1(%arg0: i32) -> (i32, i32) {
    %c0_i32 = arith.constant 0 : i32
    %c0_i32_0 = arith.constant 0 : i32
    %c0_i32_1 = arith.constant 0 : i32
    return %c0_i32, %c0_i32_0 : i32, i32
  }
  func.func @transform_2(%arg0: i32) -> (i32, i32) {
    %c0_i32 = arith.constant 0 : i32
    %c0_i32_0 = arith.constant 0 : i32
    %c0_i32_1 = arith.constant 0 : i32
    return %c0_i32, %c0_i32_0 : i32, i32
  }
  func.func @transform_3(%arg0: i32) -> (i32, i32) {
    %c0_i32 = arith.constant 0 : i32
    %c0_i32_0 = arith.constant 0 : i32
    %c0_i32_1 = arith.constant 0 : i32
    return %c0_i32, %c0_i32_0 : i32, i32
  }
  func.func @transform_4(%arg0: i32) -> (i32, i32) {
    %c0_i32 = arith.constant 0 : i32
    %c0_i32_0 = arith.constant 0 : i32
    %c0_i32_1 = arith.constant 0 : i32
    return %c0_i32, %c0_i32_0 : i32, i32
  }
  func.func @transform_5(%arg0: i32) -> (i32, i32) {
    %c0_i32 = arith.constant 0 : i32
    %c0_i32_0 = arith.constant 0 : i32
    %c0_i32_1 = arith.constant 0 : i32
    return %c0_i32, %c0_i32_0 : i32, i32
  }
  func.func @transform_6(%arg0: i32) -> (i32, i32) {
    %c0_i32 = arith.constant 0 : i32
    %c0_i32_0 = arith.constant 0 : i32
    %c0_i32_1 = arith.constant 0 : i32
    return %c0_i32, %c0_i32_0 : i32, i32
  }
  func.func @transform_7(%arg0: i32) -> (i32, i32) {
    %c0_i32 = arith.constant 0 : i32
    %c0_i32_0 = arith.constant 0 : i32
    return %arg0, %c0_i32 : i32, i32
  }
}

</mosaic_0001>

<llo_original>
// kernel: tpu_custom_call.1
$region0: #{tpu_custom_call.1}
  #allocation0 [shape = 'u32[]', space=smem, size = 0x4, offset = 0x4, fixed_abs, tag = 'smem constant byte address 0x4 - core index']
  #allocation1 [shape = 'u32[144,128]{1,0:T(1,128)}', space=vmem, size = 0x12000, scoped, tag = 'internal scratch']
  %s0 = inlined_call_operand.vmem [shape: f32[16,1], index: 0, kind: input, shape index: {}]
  %s1 = inlined_call_operand.vmem [shape: f32[1,128], index: 1, kind: input, shape index: {}]
  %s2 = inlined_call_operand.vmem [shape: f32[1,128], index: 2, kind: input, shape index: {}]
  %s3 = inlined_call_operand.vmem [shape: f32[128,128], index: 3, kind: input, shape index: {}]
  %s4 = inlined_call_operand.vmem [shape: f32[1,128], index: 4, kind: input, shape index: {}]
  %s5 = inlined_call_operand.vmem [shape: f32[128,4], index: 5, kind: input, shape index: {}]
  %s6 = inlined_call_operand.vmem [shape: f32[1,4], index: 6, kind: input, shape index: {}]
  %s7 = inlined_call_operand.vmem [shape: f32[16,4], index: 7, kind: output, shape index: {}]
  %s8 = sld [smem:[#allocation0]]
  $region61: #{tpu_custom_call.1} parent=0
    _
  %s10 = ssub.s32 1, %s8
  %s11 = scalar_select 0, %s10, %s8
  loop: start=0, step=1, limit=4
  $region2: #{tpu_custom_call.1} parent=0 // loop_pre_header
    _
  $region3: #{tpu_custom_call.1} parent=0 // loop_header
    %s13 = sphi 0, %s17
    %p14 = scmp.ge.s32.totalorder %s13, 4
    %s23 = sphi 0, %s25
    %s26 = sphi 0, %s23
    %s27 = sphi 0, %s26
    %s43 = sphi 0, %s27
    %s47 = sphi 0, %s47
    %s49 = sphi 0, %s47
    %s50 = sphi 0, %s49
    %s64 = sphi 0, %s50
    %s68 = sphi 0, %s68
    %s70 = sphi 0, %s68
    %s71 = sphi 0, %s70
    %s85 = sphi 0, %s71
    %s89 = sphi 0, %s89
    %s91 = sphi 0, %s89
    %s92 = sphi 0, %s91
    %s106 = sphi 0, %s92
    %s110 = sphi 0, %s110
    %s112 = sphi 0, %s110
    %s113 = sphi 0, %s112
    %s127 = sphi 0, %s113
    %s131 = sphi 0, %s131
    %s133 = sphi 0, %s131
    %s134 = sphi 0, %s133
    %s148 = sphi 0, %s134
    %s152 = sphi 0, %s152
    %s154 = sphi 0, %s152
    %s155 = sphi 0, %s154
    %s169 = sphi 0, %s155
    %s175 = sphi 0, %s177
    %s178 = sphi 0, %s175
    %s179 = sphi 0, %s178
    %s195 = sphi 0, %s179
  $region4: #{tpu_custom_call.1} parent=0 // loop_header_branch
    %16 = sbr.rel (%p14) target = $region8
  $region5: #{tpu_custom_call.1} parent=0 // loop_body
    %s18 = ssub.s32 %s13, 1
    %s19 = ssub.s32 %s13, 2
    %s20 = sadd.s32 %s13, 1
    %s21 = ssub.s32 %s13, %s20
    %p22 = scmp.eq.s32.totalorder %s21, 0
    %s24 = sadd.s32 %s23, 1
    %s25 = scalar_select %p22, %s23, %s24
    %p28 = pneg %p22
    %p29 = scmp.eq.s32.totalorder %s13, 1
    %p30 = por %p28, %p29
    %p31 = scmp.ne.s32.totalorder %s23, %s26
    %p32 = scmp.eq.s32.totalorder %s13, 0
    %p33 = por %p31, %p32
    %p34 = scmp.ne.s32.totalorder %s23, %s26
    %p35 = scmp.eq.s32.totalorder %s18, 1
    %p36 = por %p34, %p35
    %p37 = scmp.ne.s32.totalorder %s26, %s27
    %p38 = scmp.eq.s32.totalorder %s18, 0
    %p39 = por %p37, %p38
    %p40 = scmp.ne.s32.totalorder %s26, %s27
    %p41 = scmp.eq.s32.totalorder %s19, 1
    %p42 = por %p40, %p41
    %p44 = scmp.ne.s32.totalorder %s27, %s43
    %p45 = scmp.eq.s32.totalorder %s19, 0
    %p46 = por %p44, %p45
    %s48 = sadd.s32 %s47, 1
    %p51 = scmp.eq.s32.totalorder %s13, 1
    %p52 = scmp.ne.s32.totalorder %s47, %s49
    %p53 = scmp.eq.s32.totalorder %s13, 0
    %p54 = por %p52, %p53
    %p55 = scmp.ne.s32.totalorder %s47, %s49
    %p56 = scmp.eq.s32.totalorder %s18, 1
    %p57 = por %p55, %p56
    %p58 = scmp.ne.s32.totalorder %s49, %s50
    %p59 = scmp.eq.s32.totalorder %s18, 0
    %p60 = por %p58, %p59
    %p61 = scmp.ne.s32.totalorder %s49, %s50
    %p62 = scmp.eq.s32.totalorder %s19, 1
    %p63 = por %p61, %p62
    %p65 = scmp.ne.s32.totalorder %s50, %s64
    %p66 = scmp.eq.s32.totalorder %s19, 0
    %p67 = por %p65, %p66
    %s69 = sadd.s32 %s68, 1
    %p72 = scmp.eq.s32.totalorder %s13, 1
    %p73 = scmp.ne.s32.totalorder %s68, %s70
    %p74 = scmp.eq.s32.totalorder %s13, 0
    %p75 = por %p73, %p74
    %p76 = scmp.ne.s32.totalorder %s68, %s70
    %p77 = scmp.eq.s32.totalorder %s18, 1
    %p78 = por %p76, %p77
    %p79 = scmp.ne.s32.totalorder %s70, %s71
    %p80 = scmp.eq.s32.totalorder %s18, 0
    %p81 = por %p79, %p80
    %p82 = scmp.ne.s32.totalorder %s70, %s71
    %p83 = scmp.eq.s32.totalorder %s19, 1
    %p84 = por %p82, %p83
    %p86 = scmp.ne.s32.totalorder %s71, %s85
    %p87 = scmp.eq.s32.totalorder %s19, 0
    %p88 = por %p86, %p87
    %s90 = sadd.s32 %s89, 1
    %p93 = scmp.eq.s32.totalorder %s13, 1
    %p94 = scmp.ne.s32.totalorder %s89, %s91
    %p95 = scmp.eq.s32.totalorder %s13, 0
    %p96 = por %p94, %p95
    %p97 = scmp.ne.s32.totalorder %s89, %s91
    %p98 = scmp.eq.s32.totalorder %s18, 1
    %p99 = por %p97, %p98
    %p100 = scmp.ne.s32.totalorder %s91, %s92
    %p101 = scmp.eq.s32.totalorder %s18, 0
    %p102 = por %p100, %p101
    %p103 = scmp.ne.s32.totalorder %s91, %s92
    %p104 = scmp.eq.s32.totalorder %s19, 1
    %p105 = por %p103, %p104
    %p107 = scmp.ne.s32.totalorder %s92, %s106
    %p108 = scmp.eq.s32.totalorder %s19, 0
    %p109 = por %p107, %p108
    %s111 = sadd.s32 %s110, 1
    %p114 = scmp.eq.s32.totalorder %s13, 1
    %p115 = scmp.ne.s32.totalorder %s110, %s112
    %p116 = scmp.eq.s32.totalorder %s13, 0
    %p117 = por %p115, %p116
    %p118 = scmp.ne.s32.totalorder %s110, %s112
    %p119 = scmp.eq.s32.totalorder %s18, 1
    %p120 = por %p118, %p119
    %p121 = scmp.ne.s32.totalorder %s112, %s113
    %p122 = scmp.eq.s32.totalorder %s18, 0
    %p123 = por %p121, %p122
    %p124 = scmp.ne.s32.totalorder %s112, %s113
    %p125 = scmp.eq.s32.totalorder %s19, 1
    %p126 = por %p124, %p125
    %p128 = scmp.ne.s32.totalorder %s113, %s127
    %p129 = scmp.eq.s32.totalorder %s19, 0
    %p130 = por %p128, %p129
    %s132 = sadd.s32 %s131, 1
    %p135 = scmp.eq.s32.totalorder %s13, 1
    %p136 = scmp.ne.s32.totalorder %s131, %s133
    %p137 = scmp.eq.s32.totalorder %s13, 0
    %p138 = por %p136, %p137
    %p139 = scmp.ne.s32.totalorder %s131, %s133
    %p140 = scmp.eq.s32.totalorder %s18, 1
    %p141 = por %p139, %p140
    %p142 = scmp.ne.s32.totalorder %s133, %s134
    %p143 = scmp.eq.s32.totalorder %s18, 0
    %p144 = por %p142, %p143
    %p145 = scmp.ne.s32.totalorder %s133, %s134
    %p146 = scmp.eq.s32.totalorder %s19, 1
    %p147 = por %p145, %p146
    %p149 = scmp.ne.s32.totalorder %s134, %s148
    %p150 = scmp.eq.s32.totalorder %s19, 0
    %p151 = por %p149, %p150
    %s153 = sadd.s32 %s152, 1
    %p156 = scmp.eq.s32.totalorder %s13, 1
    %p157 = scmp.ne.s32.totalorder %s152, %s154
    %p158 = scmp.eq.s32.totalorder %s13, 0
    %p159 = por %p157, %p158
    %p160 = scmp.ne.s32.totalorder %s152, %s154
    %p161 = scmp.eq.s32.totalorder %s18, 1
    %p162 = por %p160, %p161
    %p163 = scmp.ne.s32.totalorder %s154, %s155
    %p164 = scmp.eq.s32.totalorder %s18, 0
    %p165 = por %p163, %p164
    %p166 = scmp.ne.s32.totalorder %s154, %s155
    %p167 = scmp.eq.s32.totalorder %s19, 1
    %p168 = por %p166, %p167
    %p170 = scmp.ne.s32.totalorder %s155, %s169
    %p171 = scmp.eq.s32.totalorder %s19, 0
    %p172 = por %p170, %p171
    %s173 = ssub.s32 %s13, %s20
    %p174 = scmp.eq.s32.totalorder %s173, 0
    %s176 = sadd.s32 %s175, 1
    %s177 = scalar_select %p174, %s175, %s176
    %p180 = pneg %p174
    %p181 = scmp.eq.s32.totalorder %s13, 1
    %p182 = por %p180, %p181
    %p183 = scmp.ne.s32.totalorder %s175, %s178
    %p184 = scmp.eq.s32.totalorder %s13, 0
    %p185 = por %p183, %p184
    %p186 = scmp.ne.s32.totalorder %s175, %s178
    %p187 = scmp.eq.s32.totalorder %s18, 1
    %p188 = por %p186, %p187
    %p189 = scmp.ne.s32.totalorder %s178, %s179
    %p190 = scmp.eq.s32.totalorder %s18, 0
    %p191 = por %p189, %p190
    %p192 = scmp.ne.s32.totalorder %s178, %s179
    %p193 = scmp.eq.s32.totalorder %s19, 1
    %p194 = por %p192, %p193
    %p196 = scmp.ne.s32.totalorder %s179, %s195
    %p197 = scmp.eq.s32.totalorder %s19, 0
    %p198 = por %p196, %p197
    %p199 = scmp.le.s32.totalorder 1, %s13
    %p200 = scmp.lt.s32.totalorder %s13, 3
    %p201 = pnand %p199, %p200
    %p202 = pneg %p201
    // Predicated region
    $region9: #{tpu_custom_call.1} parent=5 // pred_check
      _
    $region10: #{tpu_custom_call.1} parent=5 // pred_check_branch
      %204 = sbr.rel (%p201) target = $region12
    $region11: #{tpu_custom_call.1} parent=5 // pred_region
      %s205 = ssub.s32 %s13, 1
      // Predicated region
      $region13: #{tpu_custom_call.1} parent=11 // pred_check
        %p206 = pneg %p60
      $region14: #{tpu_custom_call.1} parent=11 // pred_check_branch
        %208 = sbr.rel (%p206) target = $region16
      $region15: #{tpu_custom_call.1} parent=11 // pred_region
        _
      $region16: #{tpu_custom_call.1} parent=11 // pred_fallthru
        _
      // Predicated region
      $region17: #{tpu_custom_call.1} parent=11 // pred_check
        %p209 = pneg %p81
      $region18: #{tpu_custom_call.1} parent=11 // pred_check_branch
        %211 = sbr.rel (%p209) target = $region20
      $region19: #{tpu_custom_call.1} parent=11 // pred_region
        _
      $region20: #{tpu_custom_call.1} parent=11 // pred_fallthru
        _
      // Predicated region
      $region21: #{tpu_custom_call.1} parent=11 // pred_check
        %p212 = pneg %p102
      $region22: #{tpu_custom_call.1} parent=11 // pred_check_branch
        %214 = sbr.rel (%p212) target = $region24
      $region23: #{tpu_custom_call.1} parent=11 // pred_region
        _
      $region24: #{tpu_custom_call.1} parent=11 // pred_fallthru
        _
      // Predicated region
      $region25: #{tpu_custom_call.1} parent=11 // pred_check
        %p215 = pneg %p123
      $region26: #{tpu_custom_call.1} parent=11 // pred_check_branch
        %217 = sbr.rel (%p215) target = $region28
      $region27: #{tpu_custom_call.1} parent=11 // pred_region
        _
      $region28: #{tpu_custom_call.1} parent=11 // pred_fallthru
        _
      // Predicated region
      $region29: #{tpu_custom_call.1} parent=11 // pred_check
        %p218 = pneg %p144
      $region30: #{tpu_custom_call.1} parent=11 // pred_check_branch
        %220 = sbr.rel (%p218) target = $region32
      $region31: #{tpu_custom_call.1} parent=11 // pred_region
        _
      $region32: #{tpu_custom_call.1} parent=11 // pred_fallthru
        _
      // Predicated region
      $region33: #{tpu_custom_call.1} parent=11 // pred_check
        %p221 = pneg %p165
      $region34: #{tpu_custom_call.1} parent=11 // pred_check_branch
        %223 = sbr.rel (%p221) target = $region36
      $region35: #{tpu_custom_call.1} parent=11 // pred_region
        _
      $region36: #{tpu_custom_call.1} parent=11 // pred_fallthru
        _
    $region12: #{tpu_custom_call.1} parent=5 // pred_fallthru
      _
    %p224 = scmp.lt.s32.totalorder %s13, 2
    // Predicated region
    $region37: #{tpu_custom_call.1} parent=5 // pred_check
      %p225 = pneg %p224
    $region38: #{tpu_custom_call.1} parent=5 // pred_check_branch
      %227 = sbr.rel (%p225) target = $region40
    $region39: #{tpu_custom_call.1} parent=5 // pred_region
      // Predicated region
      $region41: #{tpu_custom_call.1} parent=39 // pred_check
        %p228 = pneg %p33
      $region42: #{tpu_custom_call.1} parent=39 // pred_check_branch
        %230 = sbr.rel (%p228) target = $region44
      $region43: #{tpu_custom_call.1} parent=39 // pred_region
        %p231 = scmp.lt.s32.totalorder %s13, 1
        %s232 = scalar_select %p231, %s13, 1
        %s233 = smul.addr %s232, 8
        %s234 = scalar_lea.vmem %s0, %s233
      $region44: #{tpu_custom_call.1} parent=39 // pred_fallthru
        _
    $region40: #{tpu_custom_call.1} parent=5 // pred_fallthru
      _
    %p235 = scmp.le.s32.totalorder 1, %s13
    %p236 = scmp.lt.s32.totalorder %s13, 3
    %p237 = pnand %p235, %p236
    %p238 = pneg %p237
    // Predicated region
    $region45: #{tpu_custom_call.1} parent=5 // pred_check
      _
    $region46: #{tpu_custom_call.1} parent=5 // pred_check_branch
      %240 = sbr.rel (%p237) target = $region48
    $region47: #{tpu_custom_call.1} parent=5 // pred_region
      %s241 = ssub.s32 %s13, 1
      %p242 = scmp.lt.s32.totalorder %s18, 1
      %s243 = scalar_select %p242, %s18, 1
      %s244 = smul.addr %s243, 8
      %s245 = scalar_lea.vmem %s0, %s244
      %p246 = pneg %p39
      %p247 = pneg %p36
      %p248 = pneg %p60
      %p249 = pneg %p57
      %p250 = pneg %p81
      %p251 = pneg %p78
      %p252 = pneg %p102
      %p253 = pneg %p99
      %p254 = pneg %p123
      %p255 = pneg %p120
      %p256 = pneg %p144
      %p257 = pneg %p141
      %p258 = pneg %p165
      %p259 = pneg %p162
      %p260 = pneg %p191
      %p261 = pneg %p188
      %p262 = scmp.lt.s32.totalorder %s18, 1
      %s263 = scalar_select %p262, %s18, 1
      %s264 = smul.addr %s263, 8
      %s265 = scalar_lea.vmem %s7, %s264
      %p266 = scmp.lt.s32.totalorder %s18, 1
      %s267 = scalar_select %p266, %s18, 1
      %s268 = smul.addr %s267, 8
      %s269 = scalar_lea.vmem %s0, %s268
      %p270 = scmp.lt.s32.totalorder %s18, 1
      %s271 = scalar_select %p270, %s18, 1
      %s272 = smul.addr %s271, 8
      %s273 = scalar_lea.vmem %s7, %s272
      %v274 = vld [vmem:[%s269] sm:$0xff]
      %v275 = vld [vmem:[%s1] sm:$0x1]
      %v276 = vld [vmem:[%s2] sm:$0x1]
      %278 = vset.pattern.permute.xlu0 0
      %279 = vperm.xlu0 %278, %v274
      %v280 = vpop.permute.xlu0 %279
      %v283 = vlaneseq
      %v284 = vshrl.u32 %v283, 7
      %v285 = vsub.s32 0, %v284
      %v286 = vrot.slane %v275, %v285
      %v288 = vmul.f32 %v280, %v286
      %v290 = vlaneseq
      %v291 = vshrl.u32 %v290, 7
      %v292 = vsub.s32 0, %v291
      %v293 = vrot.slane %v276, %v292
      %v295 = vadd.f32 %v293, %v288
      %v296 = vmax.f32 %v295, 0.0
      %v297 = vld [vmem:[%s3] sm:$0xff]
      %v298 = vld [vmem:[%s3 + $0x8] sm:$0xff]
      %v299 = vld [vmem:[%s3 + $0x10] sm:$0xff]
      %v300 = vld [vmem:[%s3 + $0x18] sm:$0xff]
      %v301 = vld [vmem:[%s3 + $0x20] sm:$0xff]
      %v302 = vld [vmem:[%s3 + $0x28] sm:$0xff]
      %v303 = vld [vmem:[%s3 + $0x30] sm:$0xff]
      %v304 = vld [vmem:[%s3 + $0x38] sm:$0xff]
      %v305 = vld [vmem:[%s3 + $0x40] sm:$0xff]
      %v306 = vld [vmem:[%s3 + $0x48] sm:$0xff]
      %v307 = vld [vmem:[%s3 + $0x50] sm:$0xff]
      %v308 = vld [vmem:[%s3 + $0x58] sm:$0xff]
      %v309 = vld [vmem:[%s3 + $0x60] sm:$0xff]
      %v310 = vld [vmem:[%s3 + $0x68] sm:$0xff]
      %v311 = vld [vmem:[%s3 + $0x70] sm:$0xff]
      %v312 = vld [vmem:[%s3 + $0x78] sm:$0xff]
      %v313 = vld [vmem:[%s4] sm:$0x1]
      %v315 = vlaneseq
      %v316 = vshrl.u32 %v315, 7
      %v317 = vsub.s32 0, %v316
      %v318 = vrot.slane %v313, %v317
      %320 = vmatprep.subr.mxu0 0.0
      %321 = vmatpush1.msra.mxu0 %v312
      %322 = vmatprep.subr.mxu0 0.0
      %323 = vmatpush1.msra.mxu0 %v311
      %324 = vmatprep.subr.mxu0 0.0
      %325 = vmatpush1.msra.mxu0 %v310
      %326 = vmatprep.subr.mxu0 0.0
      %327 = vmatpush1.msra.mxu0 %v309
      %328 = vmatprep.subr.mxu0 0.0
      %329 = vmatpush1.msra.mxu0 %v308
      %330 = vmatprep.subr.mxu0 0.0
      %331 = vmatpush1.msra.mxu0 %v307
      %332 = vmatprep.subr.mxu0 0.0
      %333 = vmatpush1.msra.mxu0 %v306
      %334 = vmatprep.subr.mxu0 0.0
      %335 = vmatpush1.msra.mxu0 %v305
      %336 = vmatprep.subr.mxu0 0.0
      %337 = vmatpush1.msra.mxu0 %v304
      %338 = vmatprep.subr.mxu0 0.0
      %339 = vmatpush1.msra.mxu0 %v303
      %340 = vmatprep.subr.mxu0 0.0
      %341 = vmatpush1.msra.mxu0 %v302
      %342 = vmatprep.subr.mxu0 0.0
      %343 = vmatpush1.msra.mxu0 %v301
      %344 = vmatprep.subr.mxu0 0.0
      %345 = vmatpush1.msra.mxu0 %v300
      %346 = vmatprep.subr.mxu0 0.0
      %347 = vmatpush1.msra.mxu0 %v299
      %348 = vmatprep.subr.mxu0 0.0
      %349 = vmatpush1.msra.mxu0 %v298
      %350 = vmatprep.subr.mxu0 0.0
      %351 = vmatpush1.msra.mxu0 %v297
      %352 = vmatprep.subr.mxu0 0.0
      %353 = vmatpush2.msra.mxu0 0.0
      %354 = vmatprep.subr.mxu0 0.0
      %355 = vmatpush2.msra.mxu0 0.0
      %356 = vmatprep.subr.mxu0 0.0
      %357 = vmatpush2.msra.mxu0 0.0
      %358 = vmatprep.subr.mxu0 0.0
      %359 = vmatpush2.msra.mxu0 0.0
      %360 = vmatprep.subr.mxu0 0.0
      %361 = vmatpush2.msra.mxu0 0.0
      %362 = vmatprep.subr.mxu0 0.0
      %363 = vmatpush2.msra.mxu0 0.0
      %364 = vmatprep.subr.mxu0 0.0
      %365 = vmatpush2.msra.mxu0 0.0
      %366 = vmatprep.subr.mxu0 0.0
      %367 = vmatpush2.msra.mxu0 0.0
      %368 = vmatprep.subr.mxu0 0.0
      %369 = vmatpush2.msra.mxu0 0.0
      %370 = vmatprep.subr.mxu0 0.0
      %371 = vmatpush2.msra.mxu0 0.0
      %372 = vmatprep.subr.mxu0 0.0
      %373 = vmatpush2.msra.mxu0 0.0
      %374 = vmatprep.subr.mxu0 0.0
      %375 = vmatpush2.msra.mxu0 0.0
      %376 = vmatprep.subr.mxu0 0.0
      %377 = vmatpush2.msra.mxu0 0.0
      %378 = vmatprep.subr.mxu0 0.0
      %379 = vmatpush2.msra.mxu0 0.0
      %380 = vmatprep.subr.mxu0 0.0
      %381 = vmatpush2.msra.mxu0 0.0
      %382 = vmatprep.subr.mxu0 0.0
      %383 = vmatpush2.msra.mxu0 0.0
      %384 = vmatprep.mubr.f32.mxu0 0.0
      %385 = vmatmul.mubr.f32.gmra.mxu0 %v296
      %v386 = vpop.f32.mrf.mxu0
      %v387 = vadd.f32 %v318, %v386
      %v388 = vpop.f32.mrf.mxu0
      %389 = vdwg.mxu0
      %v390 = vmax.f32 %v387, 0.0
      %v391 = vld [vmem:[%s5] sm:$0xff]
      %v392 = vld [vmem:[%s5 + $0x8] sm:$0xff]
      %v393 = vld [vmem:[%s5 + $0x10] sm:$0xff]
      %v394 = vld [vmem:[%s5 + $0x18] sm:$0xff]
      %v395 = vld [vmem:[%s5 + $0x20] sm:$0xff]
      %v396 = vld [vmem:[%s5 + $0x28] sm:$0xff]
      %v397 = vld [vmem:[%s5 + $0x30] sm:$0xff]
      %v398 = vld [vmem:[%s5 + $0x38] sm:$0xff]
      %v399 = vld [vmem:[%s5 + $0x40] sm:$0xff]
      %v400 = vld [vmem:[%s5 + $0x48] sm:$0xff]
      %v401 = vld [vmem:[%s5 + $0x50] sm:$0xff]
      %v402 = vld [vmem:[%s5 + $0x58] sm:$0xff]
      %v403 = vld [vmem:[%s5 + $0x60] sm:$0xff]
      %v404 = vld [vmem:[%s5 + $0x68] sm:$0xff]
      %v405 = vld [vmem:[%s5 + $0x70] sm:$0xff]
      %v406 = vld [vmem:[%s5 + $0x78] sm:$0xff]
      %v407 = vld [vmem:[%s6] sm:$0x1]
      %v409 = vlaneseq
      %v410 = vshrl.u32 %v409, 7
      %v411 = vsub.s32 0, %v410
      %v412 = vrot.slane %v407, %v411
      %414 = vmatprep.subr.mxu0 0.0
      %415 = vmatpush1.msra.mxu0 %v406
      %416 = vmatprep.subr.mxu0 0.0
      %417 = vmatpush1.msra.mxu0 %v405
      %418 = vmatprep.subr.mxu0 0.0
      %419 = vmatpush1.msra.mxu0 %v404
      %420 = vmatprep.subr.mxu0 0.0
      %421 = vmatpush1.msra.mxu0 %v403
      %422 = vmatprep.subr.mxu0 0.0
      %423 = vmatpush1.msra.mxu0 %v402
      %424 = vmatprep.subr.mxu0 0.0
      %425 = vmatpush1.msra.mxu0 %v401
      %426 = vmatprep.subr.mxu0 0.0
      %427 = vmatpush1.msra.mxu0 %v400
      %428 = vmatprep.subr.mxu0 0.0
      %429 = vmatpush1.msra.mxu0 %v399
      %430 = vmatprep.subr.mxu0 0.0
      %431 = vmatpush1.msra.mxu0 %v398
      %432 = vmatprep.subr.mxu0 0.0
      %433 = vmatpush1.msra.mxu0 %v397
      %434 = vmatprep.subr.mxu0 0.0
      %435 = vmatpush1.msra.mxu0 %v396
      %436 = vmatprep.subr.mxu0 0.0
      %437 = vmatpush1.msra.mxu0 %v395
      %438 = vmatprep.subr.mxu0 0.0
      %439 = vmatpush1.msra.mxu0 %v394
      %440 = vmatprep.subr.mxu0 0.0
      %441 = vmatpush1.msra.mxu0 %v393
      %442 = vmatprep.subr.mxu0 0.0
      %443 = vmatpush1.msra.mxu0 %v392
      %444 = vmatprep.subr.mxu0 0.0
      %445 = vmatpush1.msra.mxu0 %v391
      %446 = vmatprep.subr.mxu0 0.0
      %447 = vmatpush2.msra.mxu0 0.0
      %448 = vmatprep.subr.mxu0 0.0
      %449 = vmatpush2.msra.mxu0 0.0
      %450 = vmatprep.subr.mxu0 0.0
      %451 = vmatpush2.msra.mxu0 0.0
      %452 = vmatprep.subr.mxu0 0.0
      %453 = vmatpush2.msra.mxu0 0.0
      %454 = vmatprep.subr.mxu0 0.0
      %455 = vmatpush2.msra.mxu0 0.0
      %456 = vmatprep.subr.mxu0 0.0
      %457 = vmatpush2.msra.mxu0 0.0
      %458 = vmatprep.subr.mxu0 0.0
      %459 = vmatpush2.msra.mxu0 0.0
      %460 = vmatprep.subr.mxu0 0.0
      %461 = vmatpush2.msra.mxu0 0.0
      %462 = vmatprep.subr.mxu0 0.0
      %463 = vmatpush2.msra.mxu0 0.0
      %464 = vmatprep.subr.mxu0 0.0
      %465 = vmatpush2.msra.mxu0 0.0
      %466 = vmatprep.subr.mxu0 0.0
      %467 = vmatpush2.msra.mxu0 0.0
      %468 = vmatprep.subr.mxu0 0.0
      %469 = vmatpush2.msra.mxu0 0.0
      %470 = vmatprep.subr.mxu0 0.0
      %471 = vmatpush2.msra.mxu0 0.0
      %472 = vmatprep.subr.mxu0 0.0
      %473 = vmatpush2.msra.mxu0 0.0
      %474 = vmatprep.subr.mxu0 0.0
      %475 = vmatpush2.msra.mxu0 0.0
      %476 = vmatprep.subr.mxu0 0.0
      %477 = vmatpush2.msra.mxu0 0.0
      %478 = vmatprep.mubr.f32.mxu0 0.0
      %479 = vmatmul.mubr.f32.gmra.mxu0 %v390
      %v480 = vpop.f32.mrf.mxu0
      %v481 = vadd.f32 %v412, %v480
      %v482 = vpop.f32.mrf.mxu0
      %483 = vdwg.mxu0
      %vm484 = vcmask 31744
      %485 = vst.msk [vmem:[%s273] sm:$0xff] %vm484, %v481
      %p486 = scmp.lt.s32.totalorder %s18, 1
      %s487 = scalar_select %p486, %s18, 1
      %s488 = smul.addr %s487, 8
      %s489 = scalar_lea.vmem %s7, %s488
      // Predicated region
      $region49: #{tpu_custom_call.1} parent=47 // pred_check
        %p490 = pneg %p188
      $region50: #{tpu_custom_call.1} parent=47 // pred_check_branch
        %492 = sbr.rel (%p490) target = $region52
      $region51: #{tpu_custom_call.1} parent=47 // pred_region
        _
      $region52: #{tpu_custom_call.1} parent=47 // pred_fallthru
        _
    $region48: #{tpu_custom_call.1} parent=5 // pred_fallthru
      _
    %p493 = scmp.le.s32.totalorder 2, %s13
    // Predicated region
    $region53: #{tpu_custom_call.1} parent=5 // pred_check
      %p494 = pneg %p493
    $region54: #{tpu_custom_call.1} parent=5 // pred_check_branch
      %496 = sbr.rel (%p494) target = $region56
    $region55: #{tpu_custom_call.1} parent=5 // pred_region
      %s497 = ssub.s32 %s13, 2
      // Predicated region
      $region57: #{tpu_custom_call.1} parent=55 // pred_check
        %p498 = pneg %p194
      $region58: #{tpu_custom_call.1} parent=55 // pred_check_branch
        %500 = sbr.rel (%p498) target = $region60
      $region59: #{tpu_custom_call.1} parent=55 // pred_region
        %p501 = scmp.lt.s32.totalorder %s19, 1
        %s502 = scalar_select %p501, %s19, 1
        %s503 = smul.addr %s502, 8
        %s504 = scalar_lea.vmem %s7, %s503
      $region60: #{tpu_custom_call.1} parent=55 // pred_fallthru
        _
    $region56: #{tpu_custom_call.1} parent=5 // pred_fallthru
      _
  $region6: #{tpu_custom_call.1} parent=0 // loop_footer
    %s17 = sadd.s32 1, %s13
  $region7: #{tpu_custom_call.1} parent=0 // loop_footer_branch
    %12 = sbr.rel target = $region3
  $region8: #{tpu_custom_call.1} parent=0 // loop_exit
    _

</llo_original>
